<compile_context>
chip_gen: v7x
topology: tpu7x:2x2x1
jax: 0.10.0
libtpu: 0.0.40
codegen_flags: <defaults>
</compile_context>

<pallas_src>
import functools

import jax
import jax.numpy as jnp
from jax.experimental import pallas as pl
from jax.experimental.pallas import tpu as pltpu

# Module hyper-parameters (static, baked into the kernel's unrolled loops).
MIN_W, MAX_W = 3, 5
WIDTHS = tuple(range(MIN_W, MAX_W + 1))            # filter widths 3, 4, 5
TAP_BASE = tuple(sum(WIDTHS[:i]) for i in range(len(WIDTHS)))
N_TAPS = sum(WIDTHS)                               # 3 + 4 + 5 = 12
N_WIDTHS = len(WIDTHS)
CARRY = 8                                          # x halo rows kept across seq tiles (>= MAX_W-1,
                                                   # multiple of 8 so the tile merge stays layout-free)
NEG_SLOPE = 0.01                                   # nn.LeakyReLU default slope
MATMUL_DTYPE = jnp.bfloat16                        # MXU input dtype (f32 accumulate)
VMEM_BUDGET = 16 * 1024 * 1024                     # per-step target; safe on v7x's 64 MiB VMEM


def _disc_kernel(x_ref, wt_ref, bconv_ref, w1_ref, b1_ref, w2_ref, b2_ref,
                 feat_ref, pc_ref, carry_ref, max_ref, *, seq_len, multi_seq):
    """One (batch_tile, seq_tile) grid step.

    Grid = (batch tiles ["parallel"], sequence tiles ["arbitrary"]).  The
    per-width running max and the CARRY-row x halo live in VMEM scratch; the
    FC head runs once on the last sequence step.
    """
    s = pl.program_id(1)
    bt, st, D = x_ref.shape
    NTF = wt_ref.shape[1]
    F = NTF // N_TAPS

    @pl.when(s == 0)
    def _():
        # Post-ReLU max is >= 0, so 0 is a valid identity for the running max.
        max_ref[...] = jnp.zeros_like(max_ref)
        carry_ref[...] = jnp.zeros_like(carry_ref)

    x_tile = x_ref[...]                                         # (bt, st, D) bf16
    if multi_seq:
        # Extended tile = [CARRY previous rows | this tile]; conv windows whose
        # END falls in this tile are computed here (exactly st per width).
        x_ext = jnp.concatenate([carry_ref[...], x_tile], axis=1)
        carry_ref[...] = x_tile[:, st - CARRY:, :]              # halo for next seq step
        ext_len = st + CARRY
    else:
        x_ext = x_tile
        ext_len = st

    # Single fused MXU projection onto all 12 tap-stacked filters (f32 acc).
    x2 = x_ext.reshape(bt * ext_len, D)
    proj = jnp.dot(x2, wt_ref[...], preferred_element_type=jnp.float32)
    proj = proj.reshape(bt, ext_len, NTF)

    bconv = bconv_ref[...]                                      # (N_WIDTHS, F)
    prev_max = max_ref[...]                                     # (bt, N_WIDTHS*F)
    if multi_seq:
        # Global conv-window start for local output j: t = s*st - (width-1) + j.
        j_idx = jax.lax.broadcasted_iota(jnp.int32, (1, st, 1), 1)

    new_max = []
    for i, width in enumerate(WIDTHS):                          # static -> fully unrolled
        base = TAP_BASE[i]
        if multi_seq:
            e0 = CARRY - width + 1
            n_out = st
        else:
            e0 = 0
            n_out = st - width + 1
        # Shifted-sum over taps in F-space (f32 VPU adds on per-tap chunks).
        acc = proj[:, e0:e0 + n_out, base * F:(base + 1) * F]
        for k in range(1, width):
            col = base + k
            acc = acc + proj[:, e0 + k:e0 + k + n_out, col * F:(col + 1) * F]
        acc = acc + bconv[i][None, None, :]
        if multi_seq:
            t = s * st - (width - 1) + j_idx
            valid = (t >= 0) & (t <= seq_len - width)           # masks tile seams + S padding
            acc = jnp.where(valid, jnp.maximum(acc, 0.0), 0.0)  # ReLU; invalid -> identity 0
        else:
            acc = jnp.maximum(acc, 0.0)                         # ReLU
        tile_max = jnp.max(acc, axis=1)                         # (bt, F)
        new_max.append(jnp.maximum(prev_max[:, i * F:(i + 1) * F], tile_max))
    max_ref[...] = jnp.concatenate(new_max, axis=1)

    @pl.when(s == pl.num_programs(1) - 1)
    def _():
        feat = max_ref[...]                                     # (bt, N_WIDTHS*F) f32
        feat_ref[...] = feat.astype(feat_ref.dtype)

        # FC head on VPU/XLU (24->3 and 3->1 would be >95% padding on the MXU).
        # Unrolled per output column to avoid the (bt, 3F, 3) broadcast.
        # Dropout is identity at inference.
        # TODO(synk): training-mode dropout (stochastic masking) not implemented.
        w1 = w1_ref[...]
        b1 = b1_ref[...]
        cols = []
        for o in range(N_WIDTHS):
            cols.append(jnp.sum(feat * w1[:, o][None, :], axis=1, keepdims=True)
                        + b1[0, o])
        h = jnp.concatenate(cols, axis=1)                       # (bt, N_WIDTHS)
        h = jnp.where(h > 0, h, NEG_SLOPE * h)                  # LeakyReLU
        w2 = w2_ref[...]
        b2 = b2_ref[...]
        pc = jnp.zeros((bt, 1), jnp.float32) + b2[0, 0]
        for o in range(N_WIDTHS):
            pc = pc + h[:, o:o + 1] * w2[o, 0]
        pc_ref[...] = pc.astype(pc_ref.dtype)


def _vmem_bytes(bt, st, D, F):
    """Rough per-grid-step VMEM footprint (BlockSpec double-buffering included)."""
    NTF = N_TAPS * F
    x_tile = 2 * bt * st * D * 2                               # bf16 x block, 2 pipeline bufs
    weights = 2 * (D * NTF * 2
                   + (N_WIDTHS * F + N_WIDTHS * F * N_WIDTHS + 2 * N_WIDTHS + 2) * 4)
    x_ext = bt * (st + CARRY) * D * 2                          # halo concat (bf16)
    proj = bt * (st + CARRY) * NTF * 4                         # f32 MXU output
    scratch = bt * CARRY * D * 2 + bt * N_WIDTHS * F * 4
    outs = 2 * bt * (N_WIDTHS * F + 1) * 4
    return x_tile + weights + x_ext + proj + scratch + outs


def _choose_tiles(B, S, D, F, budget=VMEM_BUDGET):
    """Pick (batch_tile, seq_tile) so the per-step footprint fits ~budget VMEM
    (safe against v7x's 64 MiB physical / 32 MiB default-scoped limit) while
    keeping >= 2 batch-grid steps when possible, so the HBM<->VMEM pipeline runs
    and the 'parallel' batch axis shards across v7x's two TensorCores."""
    # Sequence tile: full S when modest; otherwise halve a 512-row tile until
    # the smallest legal batch tile fits the budget.
    if S <= 512:
        st = S
    else:
        st = 512
        min_bt = 8 if B % 8 == 0 else B
        while st > 8 and _vmem_bytes(min_bt, st, D, F) > budget:
            st //= 2
    # Batch tile: must be B itself or a multiple-of-8 divisor of B (the output
    # blocks need (8,128)-legal leading dims unless they span the whole array).
    if B % 8 != 0:
        return B, st
    divisors = [d for d in range(8, B + 1, 8) if B % d == 0]
    fitting = [d for d in divisors if _vmem_bytes(d, st, D, F) <= budget]
    if not fitting:
        return divisors[0], st
    pipelined = [d for d in fitting if B // d >= 2]
    return (max(pipelined) if pipelined else max(fitting)), st


def cnn_discriminator(x, params, *, batch_tile=None, seq_tile=None,
                      vmem_limit_bytes=None):
    """Returns (features, p_c) exactly like the PyTorch module's forward."""
    wconv, bconv, w1, b1, w2, b2 = params
    B, S, D = x.shape
    F = wconv.shape[-1]
    assert S >= MAX_W, f"Current classifier arch needs at least seqlen {MAX_W}"

    # Pack ONLY the taps each width actually uses into a (D, N_TAPS*F) weight
    # (drops the padded tap slots), and cast BOTH MXU operands to bf16 in the
    # wrapper: halves x's HBM bytes and removes the per-step weight cast.
    pieces = [wconv[i, :w] for i, w in enumerate(WIDTHS)]        # (w, D, F) each
    w_taps = jnp.concatenate(pieces, axis=0)                     # (N_TAPS, D, F)
    w_taps = jnp.transpose(w_taps, (1, 0, 2)).reshape(D, N_TAPS * F)
    w_taps = w_taps.astype(MATMUL_DTYPE)
    x_bf = x.astype(MATMUL_DTYPE)

    auto_bt, auto_st = _choose_tiles(B, S, D, F)
    bt = auto_bt if batch_tile is None else batch_tile
    st = auto_st if seq_tile is None else min(seq_tile, S)
    assert bt == B or (B % bt == 0 and bt % 8 == 0), (
        "batch_tile must equal B or be a multiple of 8 dividing B")
    ns = -(-S // st)
    s_pad = ns * st
    assert st == s_pad or st % 8 == 0, (
        "seq_tile must span the (padded) sequence or be a multiple of 8")
    if s_pad != S:
        # Zero-pad the sequence; padded positions are masked in-kernel via seq_len.
        x_bf = jnp.pad(x_bf, ((0, 0), (0, s_pad - S), (0, 0)))

    grid = (B // bt, ns)

    def full_spec(shape):
        return pl.BlockSpec(shape, lambda b, s: (0,) * len(shape))

    in_specs = [
        pl.BlockSpec((bt, st, D), lambda b, s: (b, s, 0)),       # x (batch x seq tiled)
        full_spec((D, N_TAPS * F)),                              # stacked conv weight
        full_spec((N_WIDTHS, F)),                                # conv bias
        full_spec(w1.shape), full_spec(b1.shape),
        full_spec(w2.shape), full_spec(b2.shape),
    ]
    out_specs = (
        pl.BlockSpec((bt, N_WIDTHS * F), lambda b, s: (b, 0)),   # resident across seq axis
        pl.BlockSpec((bt, 1), lambda b, s: (b, 0)),
    )
    out_shape = (
        jax.ShapeDtypeStruct((B, N_WIDTHS * F), jnp.float32),
        jax.ShapeDtypeStruct((B, 1), jnp.float32),
    )
    scratch_shapes = [
        pltpu.VMEM((bt, CARRY, D), MATMUL_DTYPE),                # x halo carry
        pltpu.VMEM((bt, N_WIDTHS * F), jnp.float32),             # running post-ReLU max
    ]
    # Tiles are already sized against VMEM_BUDGET (incl. double-buffering), so
    # vmem_limit_bytes is normally unnecessary; prefer smaller tiles on v7x.
    compiler_params = pltpu.CompilerParams(
        dimension_semantics=("parallel", "arbitrary"),
        vmem_limit_bytes=vmem_limit_bytes,
    )
    kernel = functools.partial(_disc_kernel, seq_len=S, multi_seq=(ns > 1))
    return pl.pallas_call(
        kernel,
        grid=grid,
        out_shape=out_shape,
        in_specs=in_specs,
        out_specs=out_specs,
        scratch_shapes=scratch_shapes,
        compiler_params=compiler_params,
    )(x_bf, w_taps, bconv, w1, b1, w2, b2)


def _reference(x, params):
    """Pure-JAX reference of the PyTorch forward (inference mode, f32)."""
    wconv, bconv, w1, b1, w2, b2 = params
    feats = []
    for i, width in enumerate(WIDTHS):
        T = x.shape[1] - width + 1
        acc = jnp.zeros((x.shape[0], T, wconv.shape[-1]), jnp.float32)
        for w in range(width):
            acc = acc + jnp.einsum("btd,df->btf", x[:, w:w + T, :], wconv[i, w])
        acc = acc + bconv[i][None, None, :]
        feats.append(jnp.max(jax.nn.relu(acc), axis=1))
    feat = jnp.concatenate(feats, axis=1)
    h = feat @ w1 + b1
    h = jnp.where(h > 0, h, NEG_SLOPE * h)
    pc = h @ w2 + b2
    return feat, pc


def _init_params(key, input_dim, num_filters):
    """Deterministic synthetic parameters with the module's shapes.

    Conv2d(1, F, (w, D)) weight is (F, 1, w, D) in PyTorch; here we keep a
    padded stack of shape (n_widths, MAX_W, D, F) (pre-transposed for matmul).
    Linear weights are stored as (in, out)."""
    k = jax.random.split(key, 6)
    wconv = 0.1 * jax.random.normal(k[0], (N_WIDTHS, MAX_W, input_dim, num_filters),
                                    jnp.float32)
    bconv = 0.1 * jax.random.normal(k[1], (N_WIDTHS, num_filters), jnp.float32)
    fc_in = num_filters * N_WIDTHS
    w1 = 0.1 * jax.random.normal(k[2], (fc_in, N_WIDTHS), jnp.float32)
    b1 = 0.1 * jax.random.normal(k[3], (1, N_WIDTHS), jnp.float32)
    w2 = 0.1 * jax.random.normal(k[4], (N_WIDTHS, 1), jnp.float32)
    b2 = 0.1 * jax.random.normal(k[5], (1, 1), jnp.float32)
    return wconv, bconv, w1, b1, w2, b2


if __name__ == "__main__":
    key = jax.random.PRNGKey(0)
    kx, kp, kx2, kp2 = jax.random.split(key, 4)

    # --- main config: mbsize=2, seq_len=8, emb_dim=32, num_filters=8 (single seq tile) ---
    B, S, D, F = 2, 8, 32, 8
    x = jax.random.normal(kx, (B, S, D), jnp.float32)
    params = _init_params(kp, D, F)

    feat, p_c = cnn_discriminator(x, params)
    jax.block_until_ready((feat, p_c))

    feat_ref, pc_ref = _reference(x, params)
    assert feat.shape == (B, F * N_WIDTHS) and p_c.shape == (B, 1)
    # Tolerances account for bf16 MXU inputs (f32 accumulation).
    assert jnp.allclose(feat, feat_ref, atol=2e-2, rtol=1e-2)
    assert jnp.allclose(p_c, pc_ref, atol=2e-2, rtol=1e-2)

    # --- exercise batch tiling + seq tiling (halo carry across seams + pad masking) ---
    B2, S2 = 16, 10
    x2 = jax.random.normal(kx2, (B2, S2, D), jnp.float32)
    params2 = _init_params(kp2, D, F)
    feat2, pc2 = cnn_discriminator(x2, params2, seq_tile=8)   # auto batch_tile -> 8 (grid (2, 2))
    jax.block_until_ready((feat2, pc2))
    feat2_ref, pc2_ref = _reference(x2, params2)
    assert jnp.allclose(feat2, feat2_ref, atol=2e-2, rtol=1e-2)
    assert jnp.allclose(pc2, pc2_ref, atol=2e-2, rtol=1e-2)

    print("KERNEL_OK")
</pallas_src>

<mosaic_0001>
module attributes {stable_mosaic.version = 11 : i64} {
  func.func @_disc_kernel(%arg0: i32, %arg1: i32, %arg2: memref<2x8x32xbf16, #tpu.memory_space<vmem>>, %arg3: memref<32x96xbf16, #tpu.memory_space<vmem>>, %arg4: memref<3x8xf32, #tpu.memory_space<vmem>>, %arg5: memref<24x3xf32, #tpu.memory_space<vmem>>, %arg6: memref<1x3xf32, #tpu.memory_space<vmem>>, %arg7: memref<3x1xf32, #tpu.memory_space<vmem>>, %arg8: memref<1x1xf32, #tpu.memory_space<vmem>>, %arg9: memref<2x24xf32, #tpu.memory_space<vmem>>, %arg10: memref<2x1xf32, #tpu.memory_space<vmem>>, %arg11: memref<2x8x32xbf16, #tpu.memory_space<vmem>>, %arg12: memref<2x24xf32, #tpu.memory_space<vmem>>) attributes {dimension_semantics = [#tpu.dimension_semantics<parallel>, #tpu.dimension_semantics<arbitrary>], iteration_bounds = array<i64: 1, 1>, scalar_prefetch = 0 : i64, scratch_operands = 2 : i64, tpu.core_type = #tpu.core_type<tc>, window_params = [{transform_indices = @transform_0, window_bounds = array<i64: 2, 8, 32>}, {pipeline_mode = #tpu.pipeline_mode<synchronous>, transform_indices = @transform_1, window_bounds = array<i64: 32, 96>}, {pipeline_mode = #tpu.pipeline_mode<synchronous>, transform_indices = @transform_2, window_bounds = array<i64: 3, 8>}, {pipeline_mode = #tpu.pipeline_mode<synchronous>, transform_indices = @transform_3, window_bounds = array<i64: 24, 3>}, {pipeline_mode = #tpu.pipeline_mode<synchronous>, transform_indices = @transform_4, window_bounds = array<i64: 1, 3>}, {pipeline_mode = #tpu.pipeline_mode<synchronous>, transform_indices = @transform_5, window_bounds = array<i64: 3, 1>}, {pipeline_mode = #tpu.pipeline_mode<synchronous>, transform_indices = @transform_6, window_bounds = array<i64: 1, 1>}, {transform_indices = @transform_7, window_bounds = array<i64: 2, 24>}, {transform_indices = @transform_8, window_bounds = array<i64: 2, 1>}]} {
    %c0_i32 = arith.constant 0 : i32
    %0 = arith.cmpi eq, %arg1, %c0_i32 : i32
    %1 = arith.extui %0 : i1 to i32
    %c0_i32_0 = arith.constant 0 : i32
    %2 = arith.cmpi ne, %1, %c0_i32_0 : i32
    scf.if %2 {
      %cst_19 = arith.constant 0.000000e+00 : f32
      %66 = vector.broadcast %cst_19 : f32 to vector<2x24xf32>
      %c0_20 = arith.constant 0 : index
      %c0_21 = arith.constant 0 : index
      %67 = vector.load %arg12[%c0_20, %c0_21] : memref<2x24xf32, #tpu.memory_space<vmem>>, vector<2x24xf32>
      tpu.vector_store %arg12[%c0_20, %c0_21], %66 {strides = array<i32>} : memref<2x24xf32, #tpu.memory_space<vmem>>, vector<2x24xf32>,
      %cst_22 = arith.constant 0.000000e+00 : bf16
      %68 = vector.broadcast %cst_22 : bf16 to vector<2x8x32xbf16>
      %c0_23 = arith.constant 0 : index
      %c0_24 = arith.constant 0 : index
      %c0_25 = arith.constant 0 : index
      %69 = vector.load %arg11[%c0_23, %c0_24, %c0_25] : memref<2x8x32xbf16, #tpu.memory_space<vmem>>, vector<2x8x32xbf16>
      tpu.vector_store %arg11[%c0_23, %c0_24, %c0_25], %68 {strides = array<i32>} : memref<2x8x32xbf16, #tpu.memory_space<vmem>>, vector<2x8x32xbf16>,
    } else {
    }
    %c0 = arith.constant 0 : index
    %c0_1 = arith.constant 0 : index
    %c0_2 = arith.constant 0 : index
    %3 = vector.load %arg2[%c0, %c0_1, %c0_2] : memref<2x8x32xbf16, #tpu.memory_space<vmem>>, vector<2x8x32xbf16>
    %4 = vector.shape_cast %3 : vector<2x8x32xbf16> to vector<16x32xbf16>
    %c0_3 = arith.constant 0 : index
    %c0_4 = arith.constant 0 : index
    %5 = vector.load %arg3[%c0_3, %c0_4] : memref<32x96xbf16, #tpu.memory_space<vmem>>, vector<32x96xbf16>
    %cst = arith.constant dense<0.000000e+00> : vector<16x96xf32>
    %6 = tpu.matmul %4, %5, %cst {dimension_numbers = #tpu.dot_dimension_numbers<[1], [0], [0], [1], [0, 0, 1, 1], [], []>} : vector<16x32xbf16>, vector<32x96xbf16>, vector<16x96xf32> -> vector<16x96xf32>
    %7 = vector.shape_cast %6 : vector<16x96xf32> to vector<2x8x96xf32>
    %c0_5 = arith.constant 0 : index
    %c0_6 = arith.constant 0 : index
    %8 = vector.load %arg4[%c0_5, %c0_6] : memref<3x8xf32, #tpu.memory_space<vmem>>, vector<3x8xf32>
    %c0_7 = arith.constant 0 : index
    %c0_8 = arith.constant 0 : index
    %9 = vector.load %arg12[%c0_7, %c0_8] : memref<2x24xf32, #tpu.memory_space<vmem>>, vector<2x24xf32>
    %10 = vector.extract_strided_slice %7 {offsets = [0, 0, 0], sizes = [2, 6, 8], strides = [1, 1, 1]} : vector<2x8x96xf32> to vector<2x6x8xf32>
    %11 = vector.extract_strided_slice %7 {offsets = [0, 1, 8], sizes = [2, 6, 8], strides = [1, 1, 1]} : vector<2x8x96xf32> to vector<2x6x8xf32>
    %12 = arith.addf %10, %11 : vector<2x6x8xf32>
    %13 = vector.extract_strided_slice %7 {offsets = [0, 2, 16], sizes = [2, 6, 8], strides = [1, 1, 1]} : vector<2x8x96xf32> to vector<2x6x8xf32>
    %14 = arith.addf %12, %13 : vector<2x6x8xf32>
    %15 = vector.extract_strided_slice %8 {offsets = [0, 0], sizes = [1, 8], strides = [1, 1]} : vector<3x8xf32> to vector<1x8xf32>
    %16 = vector.shape_cast %15 : vector<1x8xf32> to vector<8xf32>
    %17 = vector.shape_cast %16 : vector<8xf32> to vector<1x1x8xf32>
    %18 = vector.broadcast %17 : vector<1x1x8xf32> to vector<2x6x8xf32>
    %19 = arith.addf %14, %18 : vector<2x6x8xf32>
    %cst_9 = arith.constant 0.000000e+00 : f32
    %20 = vector.broadcast %cst_9 : f32 to vector<2x6x8xf32>
    %21 = arith.maximumf %19, %20 : vector<2x6x8xf32>
    %cst_10 = arith.constant dense<0xFF800000> : vector<2x8xf32>
    %22 = vector.multi_reduction <maximumf>, %21, %cst_10 [1] : vector<2x6x8xf32> to vector<2x8xf32>
    %23 = vector.extract_strided_slice %9 {offsets = [0, 0], sizes = [2, 8], strides = [1, 1]} : vector<2x24xf32> to vector<2x8xf32>
    %24 = arith.maximumf %23, %22 : vector<2x8xf32>
    %25 = vector.extract_strided_slice %7 {offsets = [0, 0, 24], sizes = [2, 5, 8], strides = [1, 1, 1]} : vector<2x8x96xf32> to vector<2x5x8xf32>
    %26 = vector.extract_strided_slice %7 {offsets = [0, 1, 32], sizes = [2, 5, 8], strides = [1, 1, 1]} : vector<2x8x96xf32> to vector<2x5x8xf32>
    %27 = arith.addf %25, %26 : vector<2x5x8xf32>
    %28 = vector.extract_strided_slice %7 {offsets = [0, 2, 40], sizes = [2, 5, 8], strides = [1, 1, 1]} : vector<2x8x96xf32> to vector<2x5x8xf32>
    %29 = arith.addf %27, %28 : vector<2x5x8xf32>
    %30 = vector.extract_strided_slice %7 {offsets = [0, 3, 48], sizes = [2, 5, 8], strides = [1, 1, 1]} : vector<2x8x96xf32> to vector<2x5x8xf32>
    %31 = arith.addf %29, %30 : vector<2x5x8xf32>
    %32 = vector.extract_strided_slice %8 {offsets = [1, 0], sizes = [1, 8], strides = [1, 1]} : vector<3x8xf32> to vector<1x8xf32>
    %33 = vector.shape_cast %32 : vector<1x8xf32> to vector<8xf32>
    %34 = vector.shape_cast %33 : vector<8xf32> to vector<1x1x8xf32>
    %35 = vector.broadcast %34 : vector<1x1x8xf32> to vector<2x5x8xf32>
    %36 = arith.addf %31, %35 : vector<2x5x8xf32>
    %cst_11 = arith.constant 0.000000e+00 : f32
    %37 = vector.broadcast %cst_11 : f32 to vector<2x5x8xf32>
    %38 = arith.maximumf %36, %37 : vector<2x5x8xf32>
    %cst_12 = arith.constant dense<0xFF800000> : vector<2x8xf32>
    %39 = vector.multi_reduction <maximumf>, %38, %cst_12 [1] : vector<2x5x8xf32> to vector<2x8xf32>
    %40 = vector.extract_strided_slice %9 {offsets = [0, 8], sizes = [2, 8], strides = [1, 1]} : vector<2x24xf32> to vector<2x8xf32>
    %41 = arith.maximumf %40, %39 : vector<2x8xf32>
    %42 = vector.extract_strided_slice %7 {offsets = [0, 0, 56], sizes = [2, 4, 8], strides = [1, 1, 1]} : vector<2x8x96xf32> to vector<2x4x8xf32>
    %43 = vector.extract_strided_slice %7 {offsets = [0, 1, 64], sizes = [2, 4, 8], strides = [1, 1, 1]} : vector<2x8x96xf32> to vector<2x4x8xf32>
    %44 = arith.addf %42, %43 : vector<2x4x8xf32>
    %45 = vector.extract_strided_slice %7 {offsets = [0, 2, 72], sizes = [2, 4, 8], strides = [1, 1, 1]} : vector<2x8x96xf32> to vector<2x4x8xf32>
    %46 = arith.addf %44, %45 : vector<2x4x8xf32>
    %47 = vector.extract_strided_slice %7 {offsets = [0, 3, 80], sizes = [2, 4, 8], strides = [1, 1, 1]} : vector<2x8x96xf32> to vector<2x4x8xf32>
    %48 = arith.addf %46, %47 : vector<2x4x8xf32>
    %49 = vector.extract_strided_slice %7 {offsets = [0, 4, 88], sizes = [2, 4, 8], strides = [1, 1, 1]} : vector<2x8x96xf32> to vector<2x4x8xf32>
    %50 = arith.addf %48, %49 : vector<2x4x8xf32>
    %51 = vector.extract_strided_slice %8 {offsets = [2, 0], sizes = [1, 8], strides = [1, 1]} : vector<3x8xf32> to vector<1x8xf32>
    %52 = vector.shape_cast %51 : vector<1x8xf32> to vector<8xf32>
    %53 = vector.shape_cast %52 : vector<8xf32> to vector<1x1x8xf32>
    %54 = vector.broadcast %53 : vector<1x1x8xf32> to vector<2x4x8xf32>
    %55 = arith.addf %50, %54 : vector<2x4x8xf32>
    %cst_13 = arith.constant 0.000000e+00 : f32
    %56 = vector.broadcast %cst_13 : f32 to vector<2x4x8xf32>
    %57 = arith.maximumf %55, %56 : vector<2x4x8xf32>
    %cst_14 = arith.constant dense<0xFF800000> : vector<2x8xf32>
    %58 = vector.multi_reduction <maximumf>, %57, %cst_14 [1] : vector<2x4x8xf32> to vector<2x8xf32>
    %59 = vector.extract_strided_slice %9 {offsets = [0, 16], sizes = [2, 8], strides = [1, 1]} : vector<2x24xf32> to vector<2x8xf32>
    %60 = arith.maximumf %59, %58 : vector<2x8xf32>
    %61 = tpu.concatenate %24, %41, %60 in 1 : vector<2x8xf32>, vector<2x8xf32>, vector<2x8xf32> -> vector<2x24xf32>
    %c0_15 = arith.constant 0 : index
    %c0_16 = arith.constant 0 : index
    %62 = vector.load %arg12[%c0_15, %c0_16] : memref<2x24xf32, #tpu.memory_space<vmem>>, vector<2x24xf32>
    tpu.vector_store %arg12[%c0_15, %c0_16], %61 {strides = array<i32>} : memref<2x24xf32, #tpu.memory_space<vmem>>, vector<2x24xf32>,
    %c0_i32_17 = arith.constant 0 : i32
    %63 = arith.cmpi eq, %arg1, %c0_i32_17 : i32
    %64 = arith.extui %63 : i1 to i32
    %c0_i32_18 = arith.constant 0 : i32
    %65 = arith.cmpi ne, %64, %c0_i32_18 : i32
    scf.if %65 {
      %c0_19 = arith.constant 0 : index
      %c0_20 = arith.constant 0 : index
      %66 = vector.load %arg12[%c0_19, %c0_20] : memref<2x24xf32, #tpu.memory_space<vmem>>, vector<2x24xf32>
      %c0_21 = arith.constant 0 : index
      %c0_22 = arith.constant 0 : index
      %67 = vector.load %arg9[%c0_21, %c0_22] : memref<2x24xf32, #tpu.memory_space<vmem>>, vector<2x24xf32>
      tpu.vector_store %arg9[%c0_21, %c0_22], %66 {strides = array<i32>} : memref<2x24xf32, #tpu.memory_space<vmem>>, vector<2x24xf32>,
      %c0_23 = arith.constant 0 : index
      %c0_24 = arith.constant 0 : index
      %68 = vector.load %arg5[%c0_23, %c0_24] : memref<24x3xf32, #tpu.memory_space<vmem>>, vector<24x3xf32>
      %c0_25 = arith.constant 0 : index
      %c0_26 = arith.constant 0 : index
      %69 = vector.load %arg6[%c0_25, %c0_26] : memref<1x3xf32, #tpu.memory_space<vmem>>, vector<1x3xf32>
      %70 = vector.extract_strided_slice %68 {offsets = [0, 0], sizes = [24, 1], strides = [1, 1]} : vector<24x3xf32> to vector<24x1xf32>
      %71 = vector.shape_cast %70 : vector<24x1xf32> to vector<24xf32>
      %72 = vector.shape_cast %71 : vector<24xf32> to vector<1x24xf32>
      %73 = vector.broadcast %72 : vector<1x24xf32> to vector<2x24xf32>
      %74 = arith.mulf %66, %73 : vector<2x24xf32>
      %cst_27 = arith.constant dense<0.000000e+00> : vector<2xf32>
      %75 = vector.multi_reduction <add>, %74, %cst_27 [1] : vector<2x24xf32> to vector<2xf32>
      %76 = vector.shape_cast %75 : vector<2xf32> to vector<2x1xf32>
      %77 = vector.extract_strided_slice %69 {offsets = [0, 0], sizes = [1, 1], strides = [1, 1]} : vector<1x3xf32> to vector<1x1xf32>
      %78 = vector.extract %77[0, 0] : f32 from vector<1x1xf32>
      %79 = vector.broadcast %78 : f32 to vector<2x1xf32>
      %80 = arith.addf %76, %79 : vector<2x1xf32>
      %81 = vector.extract_strided_slice %68 {offsets = [0, 1], sizes = [24, 1], strides = [1, 1]} : vector<24x3xf32> to vector<24x1xf32>
      %82 = vector.shape_cast %81 : vector<24x1xf32> to vector<24xf32>
      %83 = vector.shape_cast %82 : vector<24xf32> to vector<1x24xf32>
      %84 = vector.broadcast %83 : vector<1x24xf32> to vector<2x24xf32>
      %85 = arith.mulf %66, %84 : vector<2x24xf32>
      %cst_28 = arith.constant dense<0.000000e+00> : vector<2xf32>
      %86 = vector.multi_reduction <add>, %85, %cst_28 [1] : vector<2x24xf32> to vector<2xf32>
      %87 = vector.shape_cast %86 : vector<2xf32> to vector<2x1xf32>
      %88 = vector.extract_strided_slice %69 {offsets = [0, 1], sizes = [1, 1], strides = [1, 1]} : vector<1x3xf32> to vector<1x1xf32>
      %89 = vector.extract %88[0, 0] : f32 from vector<1x1xf32>
      %90 = vector.broadcast %89 : f32 to vector<2x1xf32>
      %91 = arith.addf %87, %90 : vector<2x1xf32>
      %92 = vector.extract_strided_slice %68 {offsets = [0, 2], sizes = [24, 1], strides = [1, 1]} : vector<24x3xf32> to vector<24x1xf32>
      %93 = vector.shape_cast %92 : vector<24x1xf32> to vector<24xf32>
      %94 = vector.shape_cast %93 : vector<24xf32> to vector<1x24xf32>
      %95 = vector.broadcast %94 : vector<1x24xf32> to vector<2x24xf32>
      %96 = arith.mulf %66, %95 : vector<2x24xf32>
      %cst_29 = arith.constant dense<0.000000e+00> : vector<2xf32>
      %97 = vector.multi_reduction <add>, %96, %cst_29 [1] : vector<2x24xf32> to vector<2xf32>
      %98 = vector.shape_cast %97 : vector<2xf32> to vector<2x1xf32>
      %99 = vector.extract_strided_slice %69 {offsets = [0, 2], sizes = [1, 1], strides = [1, 1]} : vector<1x3xf32> to vector<1x1xf32>
      %100 = vector.extract %99[0, 0] : f32 from vector<1x1xf32>
      %101 = vector.broadcast %100 : f32 to vector<2x1xf32>
      %102 = arith.addf %98, %101 : vector<2x1xf32>
      %103 = tpu.concatenate %80, %91, %102 in 1 : vector<2x1xf32>, vector<2x1xf32>, vector<2x1xf32> -> vector<2x3xf32>
      %cst_30 = arith.constant 0.000000e+00 : f32
      %104 = vector.broadcast %cst_30 : f32 to vector<2x3xf32>
      %105 = arith.cmpf ogt, %103, %104 : vector<2x3xf32>
      %cst_31 = arith.constant 0.00999999977 : f32
      %106 = vector.broadcast %cst_31 : f32 to vector<2x3xf32>
      %107 = arith.mulf %106, %103 : vector<2x3xf32>
      %108 = arith.select %105, %103, %107 : vector<2x3xi1>, vector<2x3xf32>
      %c0_32 = arith.constant 0 : index
      %c0_33 = arith.constant 0 : index
      %109 = vector.load %arg7[%c0_32, %c0_33] : memref<3x1xf32, #tpu.memory_space<vmem>>, vector<3x1xf32>
      %c0_34 = arith.constant 0 : index
      %c0_35 = arith.constant 0 : index
      %110 = vector.load %arg8[%c0_34, %c0_35] : memref<1x1xf32, #tpu.memory_space<vmem>>, vector<1x1xf32>
      %cst_36 = arith.constant 0.000000e+00 : f32
      %111 = vector.broadcast %cst_36 : f32 to vector<2x1xf32>
      %112 = vector.extract %110[0, 0] : f32 from vector<1x1xf32>
      %113 = vector.broadcast %112 : f32 to vector<2x1xf32>
      %114 = arith.addf %111, %113 : vector<2x1xf32>
      %115 = vector.extract_strided_slice %108 {offsets = [0, 0], sizes = [2, 1], strides = [1, 1]} : vector<2x3xf32> to vector<2x1xf32>
      %116 = vector.extract_strided_slice %109 {offsets = [0, 0], sizes = [1, 1], strides = [1, 1]} : vector<3x1xf32> to vector<1x1xf32>
      %117 = vector.extract %116[0, 0] : f32 from vector<1x1xf32>
      %118 = vector.broadcast %117 : f32 to vector<2x1xf32>
      %119 = arith.mulf %115, %118 : vector<2x1xf32>
      %120 = arith.addf %114, %119 : vector<2x1xf32>
      %121 = vector.extract_strided_slice %108 {offsets = [0, 1], sizes = [2, 1], strides = [1, 1]} : vector<2x3xf32> to vector<2x1xf32>
      %122 = vector.extract_strided_slice %109 {offsets = [1, 0], sizes = [1, 1], strides = [1, 1]} : vector<3x1xf32> to vector<1x1xf32>
      %123 = vector.extract %122[0, 0] : f32 from vector<1x1xf32>
      %124 = vector.broadcast %123 : f32 to vector<2x1xf32>
      %125 = arith.mulf %121, %124 : vector<2x1xf32>
      %126 = arith.addf %120, %125 : vector<2x1xf32>
      %127 = vector.extract_strided_slice %108 {offsets = [0, 2], sizes = [2, 1], strides = [1, 1]} : vector<2x3xf32> to vector<2x1xf32>
      %128 = vector.extract_strided_slice %109 {offsets = [2, 0], sizes = [1, 1], strides = [1, 1]} : vector<3x1xf32> to vector<1x1xf32>
      %129 = vector.extract %128[0, 0] : f32 from vector<1x1xf32>
      %130 = vector.broadcast %129 : f32 to vector<2x1xf32>
      %131 = arith.mulf %127, %130 : vector<2x1xf32>
      %132 = arith.addf %126, %131 : vector<2x1xf32>
      %c0_37 = arith.constant 0 : index
      %c0_38 = arith.constant 0 : index
      %133 = vector.load %arg10[%c0_37, %c0_38] : memref<2x1xf32, #tpu.memory_space<vmem>>, vector<2x1xf32>
      tpu.vector_store %arg10[%c0_37, %c0_38], %132 {strides = array<i32>} : memref<2x1xf32, #tpu.memory_space<vmem>>, vector<2x1xf32>,
    } else {
    }
    return
  }
  func.func @transform_0(%arg0: i32, %arg1: i32) -> (i32, i32, i32) {
    %c0_i32 = arith.constant 0 : i32
    %c0_i32_0 = arith.constant 0 : i32
    return %arg0, %arg1, %c0_i32 : i32, i32, i32
  }
  func.func @transform_1(%arg0: i32, %arg1: i32) -> (i32, i32) {
    %c0_i32 = arith.constant 0 : i32
    %c0_i32_0 = arith.constant 0 : i32
    %c0_i32_1 = arith.constant 0 : i32
    return %c0_i32, %c0_i32_0 : i32, i32
  }
  func.func @transform_2(%arg0: i32, %arg1: i32) -> (i32, i32) {
    %c0_i32 = arith.constant 0 : i32
    %c0_i32_0 = arith.constant 0 : i32
    %c0_i32_1 = arith.constant 0 : i32
    return %c0_i32, %c0_i32_0 : i32, i32
  }
  func.func @transform_3(%arg0: i32, %arg1: i32) -> (i32, i32) {
    %c0_i32 = arith.constant 0 : i32
    %c0_i32_0 = arith.constant 0 : i32
    %c0_i32_1 = arith.constant 0 : i32
    return %c0_i32, %c0_i32_0 : i32, i32
  }
  func.func @transform_4(%arg0: i32, %arg1: i32) -> (i32, i32) {
    %c0_i32 = arith.constant 0 : i32
    %c0_i32_0 = arith.constant 0 : i32
    %c0_i32_1 = arith.constant 0 : i32
    return %c0_i32, %c0_i32_0 : i32, i32
  }
  func.func @transform_5(%arg0: i32, %arg1: i32) -> (i32, i32) {
    %c0_i32 = arith.constant 0 : i32
    %c0_i32_0 = arith.constant 0 : i32
    %c0_i32_1 = arith.constant 0 : i32
    return %c0_i32, %c0_i32_0 : i32, i32
  }
  func.func @transform_6(%arg0: i32, %arg1: i32) -> (i32, i32) {
    %c0_i32 = arith.constant 0 : i32
    %c0_i32_0 = arith.constant 0 : i32
    %c0_i32_1 = arith.constant 0 : i32
    return %c0_i32, %c0_i32_0 : i32, i32
  }
  func.func @transform_7(%arg0: i32, %arg1: i32) -> (i32, i32) {
    %c0_i32 = arith.constant 0 : i32
    %c0_i32_0 = arith.constant 0 : i32
    return %arg0, %c0_i32 : i32, i32
  }
  func.func @transform_8(%arg0: i32, %arg1: i32) -> (i32, i32) {
    %c0_i32 = arith.constant 0 : i32
    %c0_i32_0 = arith.constant 0 : i32
    return %arg0, %c0_i32 : i32, i32
  }
}

</mosaic_0001>

<llo_original>
// kernel: tpu_custom_call.1
$region0: #{tpu_custom_call.1}
  #allocation0 [shape = 'u32[]', space=smem, size = 0x4, offset = 0x4, fixed_abs, tag = 'smem constant byte address 0x4 - core index']
  #allocation1 [shape = 'u32[144,128]{1,0:T(1,128)}', space=vmem, size = 0x12000, scoped, tag = 'internal scratch']
  #allocation2 [shape = 'bf16[2,8,32]{2,1,0:T(8,128)(2,1)}', space=vmem, size = 0x1000, scoped, tag = 'scratch operand']
  #allocation3 [shape = 'f32[2,24]{1,0:T(2,128)}', space=vmem, size = 0x400, scoped, tag = 'scratch operand']
  #allocation4 [shape = 'f32[1,1]{1,0:T(1,128)S(1)}', space=vmem, size = 0x200, scoped, tag = 'scoped memory for tpu_custom_call.1']
  %s0 = inlined_call_operand.vmem [shape: bf16[2,8,32], index: 0, kind: input, shape index: {}]
  %s1 = inlined_call_operand.vmem [shape: bf16[32,96], index: 1, kind: input, shape index: {}]
  %s2 = inlined_call_operand.vmem [shape: f32[3,8], index: 2, kind: input, shape index: {}]
  %s3 = inlined_call_operand.vmem [shape: f32[24,3], index: 3, kind: input, shape index: {}]
  %s4 = inlined_call_operand.vmem [shape: f32[1,3], index: 4, kind: input, shape index: {}]
  %s5 = inlined_call_operand.vmem [shape: f32[3,1], index: 5, kind: input, shape index: {}]
  %s6 = inlined_call_operand.<no memory space> [shape: f32[1,1], index: 6, kind: input, shape index: {}]
  %s7 = inlined_call_operand.hbm [shape: f32[2,24], index: 7, kind: output, shape index: {0}]
  %s8 = inlined_call_operand.vmem [shape: f32[2,1], index: 8, kind: output, shape index: {1}]
  %9 = xla_tuple %s7, %s8
  %s10 = sld [smem:[#allocation0]]
  $region54: #{tpu_custom_call.1} parent=0
    _
  %s12 = ssub.s32 1, %s10
  %s13 = scalar_select 0, %s12, %s10
  %v14 = vstv %s6
  %15 = vst [vmem:[#allocation4] sm:$0x1] %v14
  $region1: #{tpu_custom_call.1} parent=0
    #allocation5 [shape = 'u8[1024]{0}', space=vmem, size = 0x400, scoped, tag = 'output window, operand 0, single buffered']
    #allocation6 [shape = 's32[1]{0}', space=sflag, size = 0x4, scoped, tag = 'scoped memory for tpu_custom_call.1']
    %16 = vsyncpa [#allocation6], 0
    // Predicated region
    $region2: #{tpu_custom_call.1} parent=1 // pred_check
      _
    $region3: #{tpu_custom_call.1} parent=1 // pred_check_branch
      %18 = sbr.rel (0) target = $region5
    $region4: #{tpu_custom_call.1} parent=1 // pred_region
      _
    $region5: #{tpu_custom_call.1} parent=1 // pred_fallthru
      _
    // Predicated region
    $region6: #{tpu_custom_call.1} parent=1 // pred_check
      _
    $region7: #{tpu_custom_call.1} parent=1 // pred_check_branch
      %20 = sbr.rel (0) target = $region9
    $region8: #{tpu_custom_call.1} parent=1 // pred_region
      _
    $region9: #{tpu_custom_call.1} parent=1 // pred_fallthru
      _
    // Predicated region
    $region10: #{tpu_custom_call.1} parent=1 // pred_check
      _
    $region11: #{tpu_custom_call.1} parent=1 // pred_check_branch
      %22 = sbr.rel (0) target = $region13
    $region12: #{tpu_custom_call.1} parent=1 // pred_region
      _
    $region13: #{tpu_custom_call.1} parent=1 // pred_fallthru
      _
    // Predicated region
    $region14: #{tpu_custom_call.1} parent=1 // pred_check
      _
    $region15: #{tpu_custom_call.1} parent=1 // pred_check_branch
      %24 = sbr.rel (0) target = $region17
    $region16: #{tpu_custom_call.1} parent=1 // pred_region
      _
    $region17: #{tpu_custom_call.1} parent=1 // pred_fallthru
      _
    // Predicated region
    $region18: #{tpu_custom_call.1} parent=1 // pred_check
      _
    $region19: #{tpu_custom_call.1} parent=1 // pred_check_branch
      %26 = sbr.rel (0) target = $region21
    $region20: #{tpu_custom_call.1} parent=1 // pred_region
      _
    $region21: #{tpu_custom_call.1} parent=1 // pred_fallthru
      _
    // Predicated region
    $region22: #{tpu_custom_call.1} parent=1 // pred_check
      _
    $region23: #{tpu_custom_call.1} parent=1 // pred_check_branch
      %28 = sbr.rel (0) target = $region25
    $region24: #{tpu_custom_call.1} parent=1 // pred_region
      _
    $region25: #{tpu_custom_call.1} parent=1 // pred_fallthru
      _
    // Predicated region
    $region26: #{tpu_custom_call.1} parent=1 // pred_check
      _
    $region27: #{tpu_custom_call.1} parent=1 // pred_check_branch
      %30 = sbr.rel (0) target = $region29
    $region28: #{tpu_custom_call.1} parent=1 // pred_region
      _
    $region29: #{tpu_custom_call.1} parent=1 // pred_fallthru
      _
    %p32 = scmp.eq.s32.totalorder 0, 0
    // Predicated region
    $region30: #{tpu_custom_call.1} parent=1 // pred_check
      %p33 = pneg %p32
    $region31: #{tpu_custom_call.1} parent=1 // pred_check_branch
      %35 = sbr.rel (%p33) target = $region33
    $region32: #{tpu_custom_call.1} parent=1 // pred_region
      %vm36 = vcmask 189440
      %37 = vst.msk [vmem:[#allocation3] sm:$0x3] %vm36, 0.0
      %vm38 = vcmask 257024
      %39 = vst.msk [vmem:[#allocation2] sm:$0xf] %vm38, 0
      %40 = vst.msk [vmem:[#allocation2 + $0x4] sm:$0xf] %vm38, 0
    $region33: #{tpu_custom_call.1} parent=1 // pred_fallthru
      _
    %v41 = vld [vmem:[%s0] sm:$0xf]
    %v42 = vld [vmem:[%s0 + $0x4] sm:$0xf]
    %v43 = vld [vmem:[%s1] sm:$0xf]
    %v44 = vld [vmem:[%s1 + $0x4] sm:$0xf]
    %v45 = vld [vmem:[%s1 + $0x8] sm:$0xf]
    %v46 = vld [vmem:[%s1 + $0xc] sm:$0xf]
    %v49 = vunpack.c.l.b16 %v41
    %v50 = vunpack.c.l.b16 %v42
    %v51 = vpack.c.b16 %v50, %v49
    %v56 = vunpack.c.l.b16 %v43
    %v57 = vunpack.c.l.b16 %v44
    %v58 = vunpack.c.l.b16 %v45
    %v59 = vunpack.c.l.b16 %v46
    %v60 = vpack.c.b16 %v57, %v56
    %v61 = vpack.c.b16 %v59, %v58
    %vm64 = vcmask 261120
    %v66 = vsel %vm64, %v51, 0
    %68 = vmatprep.subr.bf16.mxu0 0
    %69 = vmatpush1.bf16.msra.mxu0 %v60
    %70 = vmatprep.subr.bf16.mxu0 0
    %71 = vmatpush1.bf16.msra.mxu0 %v61
    %72 = vmatprep.subr.bf16.mxu0 0
    %73 = vmatpush1.bf16.msra.mxu0 0
    %74 = vmatprep.subr.bf16.mxu0 0
    %75 = vmatpush1.bf16.msra.mxu0 0
    %76 = vmatprep.subr.bf16.mxu0 0
    %77 = vmatpush1.bf16.msra.mxu0 0
    %78 = vmatprep.subr.bf16.mxu0 0
    %79 = vmatpush1.bf16.msra.mxu0 0
    %80 = vmatprep.subr.bf16.mxu0 0
    %81 = vmatpush1.bf16.msra.mxu0 0
    %82 = vmatprep.subr.bf16.mxu0 0
    %83 = vmatpush1.bf16.msra.mxu0 0
    %84 = vmatprep.subr.bf16.mxu0 0
    %85 = vmatpush1.bf16.msra.mxu0 0
    %86 = vmatprep.subr.bf16.mxu0 0
    %87 = vmatpush1.bf16.msra.mxu0 0
    %88 = vmatprep.subr.bf16.mxu0 0
    %89 = vmatpush1.bf16.msra.mxu0 0
    %90 = vmatprep.subr.bf16.mxu0 0
    %91 = vmatpush1.bf16.msra.mxu0 0
    %92 = vmatprep.subr.bf16.mxu0 0
    %93 = vmatpush1.bf16.msra.mxu0 0
    %94 = vmatprep.subr.bf16.mxu0 0
    %95 = vmatpush1.bf16.msra.mxu0 0
    %96 = vmatprep.subr.bf16.mxu0 0
    %97 = vmatpush1.bf16.msra.mxu0 0
    %98 = vmatprep.subr.bf16.mxu0 0
    %99 = vmatpush1.bf16.msra.mxu0 0
    %100 = vmatprep.mubr.bf16.mxu0 0
    %101 = vmatmul.mubr.bf16.gmra.mrb[0].mxu0 %v66
    %v102 = vpop.f32.mrb[0].mxu0
    %v103 = vadd.f32 0.0, %v102
    %v104 = vpop.f32.mrb[0].mxu0
    %v105 = vpop.f32.mrb[0].mxu0
    %v106 = vadd.f32 0.0, %v105
    %v107 = vpop.f32.mrb[0].mxu0
    %108 = vdwg.mxu0
    %v109 = vld [vmem:[%s2] sm:$0x7]
    %v110 = vld [vmem:[#allocation3] sm:$0x3]
    %v113 = vrot.slane %v103, 1
    %v114 = vrot.slane %v106, 1
    %115 = vrot.lane.b32.xlu0 %v113, 120
    %v116 = vpop.permute.xlu0 %115
    %117 = vrot.lane.b32.xlu0 %v114, 120
    %v118 = vpop.permute.xlu0 %117
    %v121 = vadd.f32 %v103, %v116
    %v122 = vadd.f32 %v106, %v118
    %v123 = vrot.slane %v103, 2
    %v124 = vrot.slane %v106, 2
    %125 = vrot.lane.b32.xlu0 %v123, 112
    %v126 = vpop.permute.xlu0 %125
    %127 = vrot.lane.b32.xlu0 %v124, 112
    %v128 = vpop.permute.xlu0 %127
    %v131 = vadd.f32 %v121, %v126
    %v132 = vadd.f32 %v122, %v128
    %v133 = vlaneseq
    %v134 = vshrl.u32 %v133, 7
    %v135 = vsub.s32 0, %v134
    %v136 = vrot.slane %v109, %v135
    %v137 = vadd.f32 %v131, %v136
    %v138 = vadd.f32 %v132, %v136
    %v139 = vmax.f32 %v137, 0.0
    %v140 = vmax.f32 %v138, 0.0
    %vm141 = vcmask 62464
    %v142 = vsel %vm141, %v139, -inf
    %v143 = vrot.slane %v142, 4
    %v144 = vmax.f32 %v142, %v143
    %v145 = vrot.slane %v144, 2
    %v146 = vmax.f32 %v144, %v145
    %v147 = vrot.slane %v146, 1
    %v148 = vmax.f32 %v146, %v147
    %v149 = vsel %vm141, %v140, -inf
    %v150 = vrot.slane %v149, 4
    %v151 = vmax.f32 %v149, %v150
    %v152 = vrot.slane %v151, 2
    %v153 = vmax.f32 %v151, %v152
    %v154 = vrot.slane %v153, 1
    %v155 = vmax.f32 %v153, %v154
    %vm158 = vcmask 1041409
    %v159 = vsel %vm158, %v155, %v148
    %v161 = vmax.f32 %v110, %v159
    %v162 = vrot.slane %v103, 3
    %v163 = vrot.slane %v106, 3
    %164 = vrot.lane.b32.xlu0 %v162, 104
    %v165 = vpop.permute.xlu0 %164
    %166 = vrot.lane.b32.xlu0 %v163, 104
    %v167 = vpop.permute.xlu0 %166
    %v170 = vadd.f32 %v131, %v165
    %v171 = vadd.f32 %v132, %v167
    %v172 = vlaneseq
    %v173 = vshrl.u32 %v172, 7
    %v174 = vsub.s32 1, %v173
    %v175 = vrot.slane %v109, %v174
    %177 = vrot.lane.b32.xlu0 %v175, 24
    %v178 = vpop.permute.xlu0 %177
    %v180 = vadd.f32 %v170, %v178
    %v181 = vadd.f32 %v171, %v178
    %v182 = vmax.f32 %v180, 0.0
    %v183 = vmax.f32 %v181, 0.0
    %vm184 = vcmask 258240
    %v185 = vsel %vm184, %v182, -inf
    %v186 = vrot.slane %v185, 4
    %v187 = vmax.f32 %v185, %v186
    %v188 = vrot.slane %v187, 2
    %v189 = vmax.f32 %v187, %v188
    %v190 = vrot.slane %v189, 1
    %v191 = vmax.f32 %v189, %v190
    %v192 = vsel %vm184, %v183, -inf
    %v193 = vrot.slane %v192, 4
    %v194 = vmax.f32 %v192, %v193
    %v195 = vrot.slane %v194, 2
    %v196 = vmax.f32 %v194, %v195
    %v197 = vrot.slane %v196, 1
    %v198 = vmax.f32 %v196, %v197
    %v201 = vsel %vm158, %v198, %v191
    %202 = vrot.lane.b32.xlu0 %v201, 112
    %v203 = vpop.permute.xlu0 %202
    %v205 = vmax.f32 %v110, %v203
    %v206 = vrot.slane %v103, 4
    %v207 = vrot.slane %v106, 4
    %208 = vrot.lane.b32.xlu0 %v206, 96
    %v209 = vpop.permute.xlu0 %208
    %210 = vrot.lane.b32.xlu0 %v207, 96
    %v211 = vpop.permute.xlu0 %210
    %v214 = vadd.f32 %v170, %v209
    %v215 = vadd.f32 %v171, %v211
    %v216 = vlaneseq
    %v217 = vshrl.u32 %v216, 7
    %v218 = vsub.s32 2, %v217
    %v219 = vrot.slane %v109, %v218
    %221 = vrot.lane.b32.xlu0 %v219, 56
    %v222 = vpop.permute.xlu0 %221
    %v224 = vadd.f32 %v214, %v222
    %v225 = vadd.f32 %v215, %v222
    %v226 = vmax.f32 %v224, 0.0
    %v227 = vmax.f32 %v225, 0.0
    %vm228 = vcmask 519616
    %v229 = vsel %vm228, %v226, -inf
    %v230 = vrot.slane %v229, 4
    %v231 = vmax.f32 %v229, %v230
    %v232 = vrot.slane %v231, 2
    %v233 = vmax.f32 %v231, %v232
    %v234 = vrot.slane %v233, 1
    %v235 = vmax.f32 %v233, %v234
    %v236 = vsel %vm228, %v227, -inf
    %v237 = vrot.slane %v236, 4
    %v238 = vmax.f32 %v236, %v237
    %v239 = vrot.slane %v238, 2
    %v240 = vmax.f32 %v238, %v239
    %v241 = vrot.slane %v240, 1
    %v242 = vmax.f32 %v240, %v241
    %v245 = vsel %vm158, %v242, %v235
    %246 = vrot.lane.b32.xlu0 %v245, 88
    %v247 = vpop.permute.xlu0 %246
    %v249 = vmax.f32 %v110, %v247
    %vm250 = vcmask 64512
    %v251 = vsel %vm250, %v161, %v205
    %vm252 = vcmask 130048
    %v253 = vsel %vm252, %v251, %v249
    %vm254 = vcmask 189440
    %255 = vst.msk [vmem:[#allocation3] sm:$0x3] %vm254, %v253
    // Predicated region
    $region34: #{tpu_custom_call.1} parent=1 // pred_check
      %p256 = pneg %p32
    $region35: #{tpu_custom_call.1} parent=1 // pred_check_branch
      %258 = sbr.rel (%p256) target = $region37
    $region36: #{tpu_custom_call.1} parent=1 // pred_region
      %v259 = vld [vmem:[#allocation3] sm:$0x3]
      %260 = vst.msk [vmem:[#allocation5] sm:$0x3] %vm254, %v259
      %v261 = vld [vmem:[%s3] sm:$0xff]
      %v262 = vld [vmem:[%s3 + $0x8] sm:$0xff]
      %v263 = vld [vmem:[%s3 + $0x10] sm:$0xff]
      %v264 = vld [vmem:[%s4] sm:$0x1]
      %268 = vset.pattern.permute.xlu0 0
      %269 = vperm.xlu0 %268, %v261
      %v270 = vpop.permute.xlu0 %269
      %271 = vset.pattern.permute.xlu0 0
      %272 = vperm.xlu0 %271, %v262
      %v273 = vpop.permute.xlu0 %272
      %274 = vset.pattern.permute.xlu0 0
      %275 = vperm.xlu0 %274, %v263
      %v276 = vpop.permute.xlu0 %275
      %v277 = vlaneseq
      %v278 = vand.u32 %v277, 127
      %v279 = vlaneseq
      %v280 = vshrl.u32 %v279, 7
      %v281 = vsub.s32 %v278, %v280
      %v282 = vrot.slane %v270, %v281
      %v283 = vadd.s32 %v278, 4294967288
      %v284 = vlaneseq
      %v285 = vshrl.u32 %v284, 7
      %v286 = vsub.s32 %v283, %v285
      %v287 = vrot.slane %v273, %v286
      %vm288 = vcmask 130112
      %v289 = vsel %vm288, %v287, %v282
      %v290 = vadd.s32 %v278, 4294967280
      %v291 = vlaneseq
      %v292 = vshrl.u32 %v291, 7
      %v293 = vsub.s32 %v290, %v292
      %v294 = vrot.slane %v276, %v293
      %vm295 = vcmask 195712
      %v296 = vsel %vm295, %v294, %v289
      %v298 = vmul.f32 %v259, %v296
      %v299 = vsel %vm254, %v298, 0.0
      %300 = vadd.xlane.f32.xlu0 %v299
      %v301 = vpop.xlane.xlu0 %300
      %s302 = vtos %v264
      %v303 = vstv %s302
      %v304 = vadd.f32 %v301, %v303
      %305 = vset.pattern.permute.xlu0 1
      %306 = vperm.xlu0 %305, %v261
      %v307 = vpop.permute.xlu0 %306
      %308 = vset.pattern.permute.xlu0 1
      %309 = vperm.xlu0 %308, %v262
      %v310 = vpop.permute.xlu0 %309
      %311 = vset.pattern.permute.xlu0 1
      %312 = vperm.xlu0 %311, %v263
      %v313 = vpop.permute.xlu0 %312
      %v314 = vlaneseq
      %v315 = vshrl.u32 %v314, 7
      %v316 = vsub.s32 %v278, %v315
      %v317 = vrot.slane %v307, %v316
      %v318 = vlaneseq
      %v319 = vshrl.u32 %v318, 7
      %v320 = vsub.s32 %v283, %v319
      %v321 = vrot.slane %v310, %v320
      %v322 = vsel %vm288, %v321, %v317
      %v323 = vlaneseq
      %v324 = vshrl.u32 %v323, 7
      %v325 = vsub.s32 %v290, %v324
      %v326 = vrot.slane %v313, %v325
      %v327 = vsel %vm295, %v326, %v322
      %v329 = vmul.f32 %v259, %v327
      %v330 = vsel %vm254, %v329, 0.0
      %331 = vadd.xlane.f32.xlu0 %v330
      %v332 = vpop.xlane.xlu0 %331
      %333 = vrot.lane.b32.xlu0 %v264, 127
      %v334 = vpop.permute.xlu0 %333
      %s335 = vtos %v334
      %v336 = vstv %s335
      %v337 = vadd.f32 %v332, %v336
      %338 = vset.pattern.permute.xlu0 2
      %339 = vperm.xlu0 %338, %v261
      %v340 = vpop.permute.xlu0 %339
      %341 = vset.pattern.permute.xlu0 2
      %342 = vperm.xlu0 %341, %v262
      %v343 = vpop.permute.xlu0 %342
      %344 = vset.pattern.permute.xlu0 2
      %345 = vperm.xlu0 %344, %v263
      %v346 = vpop.permute.xlu0 %345
      %v347 = vlaneseq
      %v348 = vshrl.u32 %v347, 7
      %v349 = vsub.s32 %v278, %v348
      %v350 = vrot.slane %v340, %v349
      %v351 = vlaneseq
      %v352 = vshrl.u32 %v351, 7
      %v353 = vsub.s32 %v283, %v352
      %v354 = vrot.slane %v343, %v353
      %v355 = vsel %vm288, %v354, %v350
      %v356 = vlaneseq
      %v357 = vshrl.u32 %v356, 7
      %v358 = vsub.s32 %v290, %v357
      %v359 = vrot.slane %v346, %v358
      %v360 = vsel %vm295, %v359, %v355
      %v362 = vmul.f32 %v259, %v360
      %v363 = vsel %vm254, %v362, 0.0
      %364 = vadd.xlane.f32.xlu0 %v363
      %v365 = vpop.xlane.xlu0 %364
      %366 = vrot.lane.b32.xlu0 %v264, 126
      %v367 = vpop.permute.xlu0 %366
      %s368 = vtos %v367
      %v369 = vstv %s368
      %v370 = vadd.f32 %v365, %v369
      %vm371 = vcmask 7168
      %v372 = vsel %vm371, %v304, %v337
      %vm373 = vcmask 15360
      %v374 = vsel %vm373, %v372, %v370
      %vm375 = vcmp.gt.f32.partialorder %v374, 0.0
      %v376 = vmul.f32 %v374, 0.01
      %v377 = vsel %vm375, %v374, %v376
      %v378 = vld [vmem:[%s5] sm:$0x7]
      %v379 = vld [vmem:[#allocation4] sm:$0x1]
      %s380 = vtos %v379
      %v381 = vstv %s380
      %v382 = vadd.f32 %v381, 0.0
      %s383 = vtos %v378
      %v384 = vstv %s383
      %v385 = vmul.f32 %v377, %v384
      %v386 = vadd.f32 %v382, %v385
      %v387 = vrot.slane %v378, 1
      %s388 = vtos %v387
      %v389 = vstv %s388
      %v390 = vmul.f32 %v377, %v389
      %392 = vrot.lane.b32.xlu0 %v390, 127
      %v393 = vpop.permute.xlu0 %392
      %v395 = vadd.f32 %v386, %v393
      %v396 = vrot.slane %v378, 2
      %s397 = vtos %v396
      %v398 = vstv %s397
      %v399 = vmul.f32 %v377, %v398
      %401 = vrot.lane.b32.xlu0 %v399, 126
      %v402 = vpop.permute.xlu0 %401
      %v404 = vadd.f32 %v395, %v402
      %vm405 = vcmask 1024
      %406 = vst.msk [vmem:[%s8] sm:$0x3] %vm405, %v404
    $region37: #{tpu_custom_call.1} parent=1 // pred_fallthru
      _
    // Predicated region
    $region38: #{tpu_custom_call.1} parent=1 // pred_check
      _
    $region39: #{tpu_custom_call.1} parent=1 // pred_check_branch
      %408 = sbr.rel (0) target = $region41
    $region40: #{tpu_custom_call.1} parent=1 // pred_region
      %s410 = ssub.s32 32, 32
      %411 = vsyncadd [#allocation6], %s410
      %s413 = sshll.u32 [#allocation5], 4
      %s414 = int_to_ptr.vmem [resolvable:$true] %s413
      %416 = dma.vmem_to_hbm [thread:$0]  %s414, 32, %s7, [#allocation6]
    $region41: #{tpu_custom_call.1} parent=1 // pred_fallthru
      _
    // Predicated region
    $region42: #{tpu_custom_call.1} parent=1 // pred_check
      _
    $region43: #{tpu_custom_call.1} parent=1 // pred_check_branch
      %418 = sbr.rel (0) target = $region45
    $region44: #{tpu_custom_call.1} parent=1 // pred_region
      _
    $region45: #{tpu_custom_call.1} parent=1 // pred_fallthru
      _
    // Predicated region
    $region46: #{tpu_custom_call.1} parent=1 // pred_check
      _
    $region47: #{tpu_custom_call.1} parent=1 // pred_check_branch
      %420 = sbr.rel (0) target = $region49
    $region48: #{tpu_custom_call.1} parent=1 // pred_region
      %421 = dma.done [#allocation6], 32
    $region49: #{tpu_custom_call.1} parent=1 // pred_fallthru
      _
    // Predicated region
    $region50: #{tpu_custom_call.1} parent=1 // pred_check
      _
    $region51: #{tpu_custom_call.1} parent=1 // pred_check_branch
      %423 = sbr.rel (0) target = $region53
    $region52: #{tpu_custom_call.1} parent=1 // pred_region
      _
    $region53: #{tpu_custom_call.1} parent=1 // pred_fallthru
      _
    %424 = vsyncpa [#allocation6], 1

</llo_original>
